<compile_context>
chip_gen: v7x
topology: tpu7x:2x2x1
jax: 0.10.0
libtpu: 0.0.40
codegen_flags: <defaults>
</compile_context>

<pallas_src>
import math

import jax
import jax.numpy as jnp
import numpy as np
from jax import lax
from jax.experimental import pallas as pl
from jax.experimental.pallas import tpu as pltpu

# ----------------------------- config ---------------------------------------
HEAD_DIM = 32
NUM_HEAD = 2
DIAG_SIZE = 2
KERNELS = ("elu", "relu")          # rank_k = 2
ATTENTION_DROPOUT = 0.0            # TODO(synk): dropout is identity (p=0 / eval); RNG dropout not implemented.
TYPE_BLEND = 2                     # sparse_ratio config value 2.5

B = 2
S = 16
D = HEAD_DIM
H = NUM_HEAD
BH = B * H
N = BH * S                         # flattened row count = 64

assert S & (S - 1) == 0, "power-of-two sequence length assumed for the shift-based head mask"
SEQ_SHIFT = S.bit_length() - 1     # row >> SEQ_SHIFT == (batch*H + head) index


# ------------------------- kernel feature maps ------------------------------
def _project_features(x, kernel_name):
    """Mirror of SparseLowrankAttention._project_features (trace-time dispatch)."""
    if kernel_name == "elu":
        return jnp.where(x > 0, x, jnp.exp(x) - 1.0) + 1.0
    elif kernel_name == "tanh":
        return jnp.tanh(x) + 1.0
    elif kernel_name == "relu":
        return jnp.maximum(x, 0.0)
    elif kernel_name == "celu":
        return jnp.where(x > 0, x, jnp.exp(x) - 1.0) + 1.0
    elif kernel_name == "sigmoid":
        return jax.nn.sigmoid(x)
    elif kernel_name == "leaky_relu":
        return jnp.where(x > 0, x, 0.01 * x) + 1.0
    elif kernel_name == "softplus":
        return jax.nn.softplus(x)
    elif kernel_name == "tanh_orthogonal":
        return 1.0 - jnp.tanh(x)
    elif kernel_name == "elu_flip":
        return jnp.where(-x > 0, -x, jnp.exp(-x) - 1.0) + 1.0
    else:
        return x


# ------------------------------ Pallas kernel -------------------------------
def _attn_kernel(ratio_ref, mask_ref, q_ref, k_ref, v_ref, o_ref):
    n, d = q_ref.shape                 # (64, 32): rows = (batch, head, seq) row-major
    sr = ratio_ref[0]                  # scalar sparse_ratio (SMEM)
    q = q_ref[...]                     # f32 (n, d)
    k = k_ref[...]
    v = v_ref[...]
    m_row = mask_ref[...]              # (1, n) key-padding mask for the flattened rows

    # ---- masks built in-kernel (band + head-block + key padding) ----
    row = lax.broadcasted_iota(jnp.int32, (n, n), 0)
    col = lax.broadcasted_iota(jnp.int32, (n, n), 1)
    same_head = (row >> SEQ_SHIFT) == (col >> SEQ_SHIFT)         # same (batch, head) block
    in_band = jnp.abs(row - col) < DIAG_SIZE
    # Finite -1e9 (NaN-safe) for out-of-band / cross-head; -1e6 for padded keys.
    add_mask = jnp.where(same_head & in_band, 0.0, -1e9) - 1e6 * (1.0 - m_row)

    # ---- sparse branch: one (n,d)@(d,n) GEMM + exact f32 row softmax ----
    scores = jnp.einsum("qd,kd->qk", q * (1.0 / math.sqrt(d)), k,
                        preferred_element_type=jnp.float32) + add_mask
    p = jnp.exp(scores - jnp.max(scores, axis=-1, keepdims=True))
    attn = p / jnp.sum(p, axis=-1, keepdims=True)                # off-block weights are exactly 0

    # ---- low-rank branch (both feature kernels fused along the feature dim) ----
    mcol = m_row.reshape(n, 1)                                   # (1,n) -> (n,1) relayout, issued once
    vm = v * mcol
    q_feat = jnp.concatenate([_project_features(q, KERNELS[0]),
                              _project_features(q, KERNELS[1])], axis=-1)          # (n, 2d)
    k_feat = jnp.concatenate([_project_features(k, KERNELS[0]),
                              _project_features(k, KERNELS[1])], axis=-1) * mcol   # (n, 2d)
    # (Q_feat @ K_feat^T) with cross-head entries zeroed == per-head Q@(K^T V) after @Vm.
    low = jnp.einsum("qf,kf->qk", q_feat, k_feat,
                     preferred_element_type=jnp.float32)
    low = jnp.where(same_head, low, 0.0)

    # ---- fused blend (type_blend == 2): one (n, 2n)@(2n, d) GEMM ----
    # out = sr * attn @ V + (1-sr) * 0.5/sqrt(S) * low @ Vm
    c_low = (1.0 - sr) * (0.5 / math.sqrt(S))
    lhs = jnp.concatenate([attn, low], axis=-1)                  # (64, 128)
    rhs = jnp.concatenate([sr * v, c_low * vm], axis=0)          # (128, 32)
    o_ref[...] = jnp.einsum("qk,kd->qd", lhs, rhs,
                            preferred_element_type=jnp.float32)  # (64, 32), BH*S-major


# ------------------------------ wrapper --------------------------------------
@jax.jit
def sparse_lowrank_attention(Q, K, V, mask, sparse_ratio):
    """Q,K,V: (B,H,S,D) f32; mask: (B,S) f32; sparse_ratio: (1,) f32."""
    b, h, s, d = Q.shape
    n = b * h * s
    q = Q.reshape(n, d)                      # free reshapes (row-major contiguous)
    k = K.reshape(n, d)
    v = V.reshape(n, d)
    # Key-padding mask replicated per head, in the flattened row order (1, n).
    mask_flat = jnp.broadcast_to(mask[:, None, :], (b, h, s)) \
        .reshape(1, n).astype(jnp.float32)

    out = pl.pallas_call(
        _attn_kernel,
        out_shape=jax.ShapeDtypeStruct((n, d), jnp.float32),
        grid=(1,),   # single step: whole problem (~40 KB) batched in VMEM
        in_specs=[
            pl.BlockSpec(memory_space=pltpu.MemorySpace.SMEM),   # sparse_ratio (1,)
            pl.BlockSpec((1, n), lambda i: (0, 0)),              # mask row
            pl.BlockSpec((n, d), lambda i: (0, 0)),              # Q  (64,32)
            pl.BlockSpec((n, d), lambda i: (0, 0)),              # K
            pl.BlockSpec((n, d), lambda i: (0, 0)),              # V
        ],
        out_specs=pl.BlockSpec((n, d), lambda i: (0, 0)),
        compiler_params=pltpu.CompilerParams(
            dimension_semantics=("arbitrary",)),
    )(sparse_ratio, mask_flat, q, k, v)

    # (BH*S, D) row-major is exactly (B,H,S,D) contiguous -> free reshape, no transpose HLO.
    return out.reshape(b, h, s, d)


# --------------------------- pure-JAX reference -------------------------------
def reference(Q, K, V, mask, sparse_ratio):
    hi = jax.lax.Precision.HIGHEST
    b, h, s, d = Q.shape
    # sparse
    dot = jnp.einsum("bhqd,bhkd->bhqk", Q, K, precision=hi) / math.sqrt(d)
    dot = dot - 1000000.0 * (1.0 - mask[:, None, None, :])
    idx = jnp.arange(s)
    band = jnp.abs(idx[:, None] - idx[None, :]) >= DIAG_SIZE
    dot = jnp.where(band[None, None], -jnp.inf, dot)
    attn = jax.nn.softmax(dot, axis=-1)
    sp = jnp.einsum("bhqk,bhkd->bhqd", attn, V, precision=hi)
    # lowrank
    vm = V * mask[:, None, :, None]
    scale = 1.0 / math.sqrt(math.sqrt(s))

    def branch(name):
        q_f = _project_features(Q, name) * scale
        k_f = _project_features(K, name) * mask[:, None, :, None] * scale
        kv = jnp.einsum("bhkd,bhke->bhde", k_f, vm, precision=hi)
        return jnp.einsum("bhqd,bhde->bhqe", q_f, kv, precision=hi)

    low = 0.5 * branch(KERNELS[0]) + 0.5 * branch(KERNELS[1])
    sr = sparse_ratio[0]
    return sr * sp + (1.0 - sr) * low


# ------------------------------- main -----------------------------------------
if __name__ == "__main__":
    key = jax.random.PRNGKey(0)
    kq, kk, kv_key = jax.random.split(key, 3)
    Q = jax.random.normal(kq, (B, H, S, D), dtype=jnp.float32)
    K = jax.random.normal(kk, (B, H, S, D), dtype=jnp.float32)
    V = jax.random.normal(kv_key, (B, H, S, D), dtype=jnp.float32)

    # mask: batch 0 fully valid; batch 1 has last 4 positions padded out.
    mask = jnp.ones((B, S), dtype=jnp.float32)
    mask = mask.at[1, -4:].set(0.0)

    # nn.Parameter(torch.Tensor([0.5])) — deterministic init.
    sparse_ratio = jnp.array([0.5], dtype=jnp.float32)

    out = sparse_lowrank_attention(Q, K, V, mask, sparse_ratio)
    out = jax.block_until_ready(out)

    ref = reference(Q, K, V, mask, sparse_ratio)
    # f32 in-kernel math vs. HIGHEST-precision f32 reference: expected error is
    # ~1e-4; the tolerance below leaves a wide margin.
    np.testing.assert_allclose(np.asarray(out), np.asarray(ref),
                               rtol=2e-2, atol=5e-2)
    print("KERNEL_OK")
</pallas_src>

<mosaic_0001>
module attributes {stable_mosaic.version = 11 : i64} {
  func.func @_attn_kernel(%arg0: i32, %arg1: memref<1xf32, #tpu.memory_space<smem>>, %arg2: memref<1x64xf32, #tpu.memory_space<vmem>>, %arg3: memref<64x32xf32, #tpu.memory_space<vmem>>, %arg4: memref<64x32xf32, #tpu.memory_space<vmem>>, %arg5: memref<64x32xf32, #tpu.memory_space<vmem>>, %arg6: memref<64x32xf32, #tpu.memory_space<vmem>>) attributes {dimension_semantics = [#tpu.dimension_semantics<arbitrary>], iteration_bounds = array<i64: 1>, scalar_prefetch = 0 : i64, scratch_operands = 0 : i64, tpu.core_type = #tpu.core_type<tc>, window_params = [{transform_indices = @transform_0, window_bounds = array<i64: 1>}, {pipeline_mode = #tpu.pipeline_mode<synchronous>, transform_indices = @transform_1, window_bounds = array<i64: 1, 64>}, {pipeline_mode = #tpu.pipeline_mode<synchronous>, transform_indices = @transform_2, window_bounds = array<i64: 64, 32>}, {pipeline_mode = #tpu.pipeline_mode<synchronous>, transform_indices = @transform_3, window_bounds = array<i64: 64, 32>}, {pipeline_mode = #tpu.pipeline_mode<synchronous>, transform_indices = @transform_4, window_bounds = array<i64: 64, 32>}, {pipeline_mode = #tpu.pipeline_mode<synchronous>, transform_indices = @transform_5, window_bounds = array<i64: 64, 32>}]} {
    %c0 = arith.constant 0 : index
    %0 = memref.load %arg1[%c0] : memref<1xf32, #tpu.memory_space<smem>>
    %c0_0 = arith.constant 0 : index
    %c0_1 = arith.constant 0 : index
    %1 = vector.load %arg3[%c0_0, %c0_1] : memref<64x32xf32, #tpu.memory_space<vmem>>, vector<64x32xf32>
    %c0_2 = arith.constant 0 : index
    %c0_3 = arith.constant 0 : index
    %2 = vector.load %arg4[%c0_2, %c0_3] : memref<64x32xf32, #tpu.memory_space<vmem>>, vector<64x32xf32>
    %c0_4 = arith.constant 0 : index
    %c0_5 = arith.constant 0 : index
    %3 = vector.load %arg5[%c0_4, %c0_5] : memref<64x32xf32, #tpu.memory_space<vmem>>, vector<64x32xf32>
    %c0_6 = arith.constant 0 : index
    %c0_7 = arith.constant 0 : index
    %4 = vector.load %arg2[%c0_6, %c0_7] : memref<1x64xf32, #tpu.memory_space<vmem>>, vector<1x64xf32>
    %5 = tpu.iota {dimensions = array<i32: 0>} : vector<64x64xi32>
    %6 = tpu.iota {dimensions = array<i32: 1>} : vector<64x64xi32>
    %c4_i32 = arith.constant 4 : i32
    %7 = vector.broadcast %c4_i32 : i32 to vector<64x64xi32>
    %8 = arith.shrsi %5, %7 : vector<64x64xi32>
    %c4_i32_8 = arith.constant 4 : i32
    %9 = vector.broadcast %c4_i32_8 : i32 to vector<64x64xi32>
    %10 = arith.shrsi %6, %9 : vector<64x64xi32>
    %11 = arith.cmpi eq, %8, %10 : vector<64x64xi32>
    %12 = arith.subi %5, %6 : vector<64x64xi32>
    %13 = math.absi %12 : vector<64x64xi32>
    %c2_i32 = arith.constant 2 : i32
    %14 = vector.broadcast %c2_i32 : i32 to vector<64x64xi32>
    %15 = arith.cmpi slt, %13, %14 : vector<64x64xi32>
    %16 = arith.andi %11, %15 : vector<64x64xi1>
    %cst = arith.constant 0.000000e+00 : f32
    %cst_9 = arith.constant -1.000000e+09 : f32
    %17 = vector.broadcast %cst : f32 to vector<64x64xf32>
    %18 = vector.broadcast %cst_9 : f32 to vector<64x64xf32>
    %19 = arith.select %16, %17, %18 : vector<64x64xi1>, vector<64x64xf32>
    %cst_10 = arith.constant 1.000000e+00 : f32
    %20 = vector.broadcast %cst_10 : f32 to vector<1x64xf32>
    %21 = arith.subf %20, %4 : vector<1x64xf32>
    %cst_11 = arith.constant 1.000000e+06 : f32
    %22 = vector.broadcast %cst_11 : f32 to vector<1x64xf32>
    %23 = arith.mulf %22, %21 : vector<1x64xf32>
    %24 = vector.broadcast %23 : vector<1x64xf32> to vector<64x64xf32>
    %25 = arith.subf %19, %24 : vector<64x64xf32>
    %cst_12 = arith.constant 0.176776692 : f32
    %26 = vector.broadcast %cst_12 : f32 to vector<64x32xf32>
    %27 = arith.mulf %1, %26 : vector<64x32xf32>
    "tpu.trace_start"() <{level = 10 : i32, message = "qd,kd->qk"}> : () -> ()
    %cst_13 = arith.constant dense<0.000000e+00> : vector<64x64xf32>
    %28 = tpu.matmul %27, %2, %cst_13 {dimension_numbers = #tpu.dot_dimension_numbers<[1], [1], [0], [0], [0, 0, 1, 0], [], []>} : vector<64x32xf32>, vector<64x32xf32>, vector<64x64xf32> -> vector<64x64xf32>
    "tpu.trace_stop"() : () -> ()
    %29 = arith.addf %28, %25 : vector<64x64xf32>
    %cst_14 = arith.constant dense<0xFF800000> : vector<64xf32>
    %30 = vector.multi_reduction <maximumf>, %29, %cst_14 [1] : vector<64x64xf32> to vector<64xf32>
    %31 = vector.shape_cast %30 : vector<64xf32> to vector<64x1xf32>
    %32 = vector.broadcast %31 : vector<64x1xf32> to vector<64x64xf32>
    %33 = arith.subf %29, %32 : vector<64x64xf32>
    %34 = math.exp %33 : vector<64x64xf32>
    %cst_15 = arith.constant dense<0.000000e+00> : vector<64xf32>
    %35 = vector.multi_reduction <add>, %34, %cst_15 [1] : vector<64x64xf32> to vector<64xf32>
    %36 = vector.shape_cast %35 : vector<64xf32> to vector<64x1xf32>
    %37 = vector.broadcast %36 : vector<64x1xf32> to vector<64x64xf32>
    %38 = arith.divf %34, %37 : vector<64x64xf32>
    %39 = vector.shape_cast %4 : vector<1x64xf32> to vector<64x1xf32>
    %40 = vector.broadcast %39 : vector<64x1xf32> to vector<64x32xf32>
    %41 = arith.mulf %3, %40 : vector<64x32xf32>
    %cst_16 = arith.constant 0.000000e+00 : f32
    %42 = vector.broadcast %cst_16 : f32 to vector<64x32xf32>
    %43 = arith.cmpf ogt, %1, %42 : vector<64x32xf32>
    %44 = math.exp %1 : vector<64x32xf32>
    %cst_17 = arith.constant 1.000000e+00 : f32
    %45 = vector.broadcast %cst_17 : f32 to vector<64x32xf32>
    %46 = arith.subf %44, %45 : vector<64x32xf32>
    %47 = arith.select %43, %1, %46 : vector<64x32xi1>, vector<64x32xf32>
    %cst_18 = arith.constant 1.000000e+00 : f32
    %48 = vector.broadcast %cst_18 : f32 to vector<64x32xf32>
    %49 = arith.addf %47, %48 : vector<64x32xf32>
    %cst_19 = arith.constant 0.000000e+00 : f32
    %50 = vector.broadcast %cst_19 : f32 to vector<64x32xf32>
    %51 = arith.maximumf %1, %50 : vector<64x32xf32>
    %52 = tpu.concatenate %49, %51 in 1 : vector<64x32xf32>, vector<64x32xf32> -> vector<64x64xf32>
    %cst_20 = arith.constant 0.000000e+00 : f32
    %53 = vector.broadcast %cst_20 : f32 to vector<64x32xf32>
    %54 = arith.cmpf ogt, %2, %53 : vector<64x32xf32>
    %55 = math.exp %2 : vector<64x32xf32>
    %cst_21 = arith.constant 1.000000e+00 : f32
    %56 = vector.broadcast %cst_21 : f32 to vector<64x32xf32>
    %57 = arith.subf %55, %56 : vector<64x32xf32>
    %58 = arith.select %54, %2, %57 : vector<64x32xi1>, vector<64x32xf32>
    %cst_22 = arith.constant 1.000000e+00 : f32
    %59 = vector.broadcast %cst_22 : f32 to vector<64x32xf32>
    %60 = arith.addf %58, %59 : vector<64x32xf32>
    %cst_23 = arith.constant 0.000000e+00 : f32
    %61 = vector.broadcast %cst_23 : f32 to vector<64x32xf32>
    %62 = arith.maximumf %2, %61 : vector<64x32xf32>
    %63 = tpu.concatenate %60, %62 in 1 : vector<64x32xf32>, vector<64x32xf32> -> vector<64x64xf32>
    %64 = vector.broadcast %39 : vector<64x1xf32> to vector<64x64xf32>
    %65 = arith.mulf %63, %64 : vector<64x64xf32>
    "tpu.trace_start"() <{level = 10 : i32, message = "qf,kf->qk"}> : () -> ()
    %cst_24 = arith.constant dense<0.000000e+00> : vector<64x64xf32>
    %66 = tpu.matmul %52, %65, %cst_24 {dimension_numbers = #tpu.dot_dimension_numbers<[1], [1], [0], [0], [0, 0, 1, 0], [], []>} : vector<64x64xf32>, vector<64x64xf32>, vector<64x64xf32> -> vector<64x64xf32>
    %cst_25 = arith.constant 0.000000e+00 : f32
    "tpu.trace_stop"() : () -> ()
    %67 = vector.broadcast %cst_25 : f32 to vector<64x64xf32>
    %68 = arith.select %11, %66, %67 : vector<64x64xi1>, vector<64x64xf32>
    %cst_26 = arith.constant 1.000000e+00 : f32
    %69 = arith.subf %cst_26, %0 : f32
    %cst_27 = arith.constant 1.250000e-01 : f32
    %70 = arith.mulf %69, %cst_27 : f32
    %71 = tpu.concatenate %38, %68 in 1 : vector<64x64xf32>, vector<64x64xf32> -> vector<64x128xf32>
    %72 = vector.broadcast %0 : f32 to vector<64x32xf32>
    %73 = arith.mulf %72, %3 : vector<64x32xf32>
    %74 = vector.broadcast %70 : f32 to vector<64x32xf32>
    %75 = arith.mulf %74, %41 : vector<64x32xf32>
    %76 = tpu.concatenate %73, %75 in 0 : vector<64x32xf32>, vector<64x32xf32> -> vector<128x32xf32>
    "tpu.trace_start"() <{level = 10 : i32, message = "qk,kd->qd"}> : () -> ()
    %cst_28 = arith.constant dense<0.000000e+00> : vector<64x32xf32>
    %77 = tpu.matmul %71, %76, %cst_28 {dimension_numbers = #tpu.dot_dimension_numbers<[1], [0], [0], [1], [0, 0, 1, 1], [], []>} : vector<64x128xf32>, vector<128x32xf32>, vector<64x32xf32> -> vector<64x32xf32>
    "tpu.trace_stop"() : () -> ()
    %c0_29 = arith.constant 0 : index
    %c0_30 = arith.constant 0 : index
    %78 = vector.load %arg6[%c0_29, %c0_30] : memref<64x32xf32, #tpu.memory_space<vmem>>, vector<64x32xf32>
    tpu.vector_store %arg6[%c0_29, %c0_30], %77 {strides = array<i32>} : memref<64x32xf32, #tpu.memory_space<vmem>>, vector<64x32xf32>,
    return
  }
  func.func @transform_0(%arg0: i32) -> i32 {
    %c0_i32 = arith.constant 0 : i32
    %c0_i32_0 = arith.constant 0 : i32
    return %c0_i32 : i32
  }
  func.func @transform_1(%arg0: i32) -> (i32, i32) {
    %c0_i32 = arith.constant 0 : i32
    %c0_i32_0 = arith.constant 0 : i32
    %c0_i32_1 = arith.constant 0 : i32
    return %c0_i32, %c0_i32_0 : i32, i32
  }
  func.func @transform_2(%arg0: i32) -> (i32, i32) {
    %c0_i32 = arith.constant 0 : i32
    %c0_i32_0 = arith.constant 0 : i32
    %c0_i32_1 = arith.constant 0 : i32
    return %c0_i32, %c0_i32_0 : i32, i32
  }
  func.func @transform_3(%arg0: i32) -> (i32, i32) {
    %c0_i32 = arith.constant 0 : i32
    %c0_i32_0 = arith.constant 0 : i32
    %c0_i32_1 = arith.constant 0 : i32
    return %c0_i32, %c0_i32_0 : i32, i32
  }
  func.func @transform_4(%arg0: i32) -> (i32, i32) {
    %c0_i32 = arith.constant 0 : i32
    %c0_i32_0 = arith.constant 0 : i32
    %c0_i32_1 = arith.constant 0 : i32
    return %c0_i32, %c0_i32_0 : i32, i32
  }
  func.func @transform_5(%arg0: i32) -> (i32, i32) {
    %c0_i32 = arith.constant 0 : i32
    %c0_i32_0 = arith.constant 0 : i32
    %c0_i32_1 = arith.constant 0 : i32
    return %c0_i32, %c0_i32_0 : i32, i32
  }
}

</mosaic_0001>

<llo_original>
// kernel: sparse_lowrank_attention.1
$region0: #{sparse_lowrank_attention.1}
  #allocation0 [shape = 'u32[]', space=smem, size = 0x4, offset = 0x4, fixed_abs, tag = 'smem constant byte address 0x4 - core index']
  #allocation1 [shape = 'u32[144,128]{1,0:T(1,128)}', space=vmem, size = 0x12000, scoped, tag = 'internal scratch']
  #allocation2 [shape = 'f32[1]{0:T(128)S(6)}', space=smem, size = 0x200, scoped, tag = 'scoped memory for sparse_lowrank_attention.1']
  %s0 = inlined_call_operand.<no memory space> [shape: f32[1], index: 0, kind: input, shape index: {}]
  %s1 = inlined_call_operand.vmem [shape: f32[1,64], index: 1, kind: input, shape index: {}]
  %s2 = inlined_call_operand.hbm [shape: f32[64,32], index: 2, kind: input, shape index: {}]
  %s3 = inlined_call_operand.hbm [shape: f32[64,32], index: 3, kind: input, shape index: {}]
  %s4 = inlined_call_operand.hbm [shape: f32[64,32], index: 4, kind: input, shape index: {}]
  %s5 = inlined_call_operand.hbm [shape: f32[64,32], index: 5, kind: output, shape index: {}]
  %s6 = sld [smem:[#allocation0]]
  $region42: #{sparse_lowrank_attention.1} parent=0
    _
  %s8 = ssub.s32 1, %s6
  %s9 = scalar_select 0, %s8, %s6
  %10 = sst [smem:[#allocation2]] %s0
  $region1: #{sparse_lowrank_attention.1} parent=0
    #allocation3 [shape = 'u8[32768]{0}', space=vmem, size = 0x8000, scoped, tag = 'input window, operand 2, single buffered']
    #allocation4 [shape = 's32[1]{0}', space=sflag, size = 0x4, scoped, tag = 'scoped memory for sparse_lowrank_attention.1']
    #allocation5 [shape = 's32[1]{0}', space=sflag, size = 0x4, scoped, tag = 'scoped memory for sparse_lowrank_attention.1']
    #allocation6 [shape = 'u8[32768]{0}', space=vmem, size = 0x8000, scoped, tag = 'input window, operand 3, single buffered']
    #allocation7 [shape = 's32[1]{0}', space=sflag, size = 0x4, scoped, tag = 'scoped memory for sparse_lowrank_attention.1']
    #allocation8 [shape = 'u8[32768]{0}', space=vmem, size = 0x8000, scoped, tag = 'input window, operand 4, single buffered']
    #allocation9 [shape = 'u8[32768]{0}', space=vmem, size = 0x8000, scoped, tag = 'output window, operand 0, single buffered']
    %11 = vsyncpa [#allocation4], 0
    %12 = vsyncpa [#allocation7], 0
    %13 = vsyncpa [#allocation5], 0
    // Predicated region
    $region2: #{sparse_lowrank_attention.1} parent=1 // pred_check
      _
    $region3: #{sparse_lowrank_attention.1} parent=1 // pred_check_branch
      %15 = sbr.rel (0) target = $region5
    $region4: #{sparse_lowrank_attention.1} parent=1 // pred_region
      _
    $region5: #{sparse_lowrank_attention.1} parent=1 // pred_fallthru
      _
    // Predicated region
    $region6: #{sparse_lowrank_attention.1} parent=1 // pred_check
      _
    $region7: #{sparse_lowrank_attention.1} parent=1 // pred_check_branch
      %17 = sbr.rel (0) target = $region9
    $region8: #{sparse_lowrank_attention.1} parent=1 // pred_region
      _
    $region9: #{sparse_lowrank_attention.1} parent=1 // pred_fallthru
      _
    // Predicated region
    $region10: #{sparse_lowrank_attention.1} parent=1 // pred_check
      _
    $region11: #{sparse_lowrank_attention.1} parent=1 // pred_check_branch
      %19 = sbr.rel (0) target = $region13
    $region12: #{sparse_lowrank_attention.1} parent=1 // pred_region
      %s21 = ssub.s32 1024, 1024
      %22 = vsyncadd [#allocation4], %s21
      %s23 = sshll.u32 [#allocation3], 4
      %s24 = int_to_ptr.vmem [resolvable:$true] %s23
      %29 = dma.hbm_to_vmem [thread:$0]  %s2, 1024, %s24, [#allocation4], 128, 128, 8
    $region13: #{sparse_lowrank_attention.1} parent=1 // pred_fallthru
      _
    // Predicated region
    $region14: #{sparse_lowrank_attention.1} parent=1 // pred_check
      _
    $region15: #{sparse_lowrank_attention.1} parent=1 // pred_check_branch
      %31 = sbr.rel (0) target = $region17
    $region16: #{sparse_lowrank_attention.1} parent=1 // pred_region
      %s33 = ssub.s32 1024, 1024
      %34 = vsyncadd [#allocation7], %s33
      %s35 = sshll.u32 [#allocation6], 4
      %s36 = int_to_ptr.vmem [resolvable:$true] %s35
      %41 = dma.hbm_to_vmem [thread:$0]  %s3, 1024, %s36, [#allocation7], 128, 128, 8
    $region17: #{sparse_lowrank_attention.1} parent=1 // pred_fallthru
      _
    // Predicated region
    $region18: #{sparse_lowrank_attention.1} parent=1 // pred_check
      _
    $region19: #{sparse_lowrank_attention.1} parent=1 // pred_check_branch
      %43 = sbr.rel (0) target = $region21
    $region20: #{sparse_lowrank_attention.1} parent=1 // pred_region
      %s45 = ssub.s32 1024, 1024
      %46 = vsyncadd [#allocation7], %s45
      %s47 = sshll.u32 [#allocation8], 4
      %s48 = int_to_ptr.vmem [resolvable:$true] %s47
      %53 = dma.hbm_to_vmem [thread:$0]  %s4, 1024, %s48, [#allocation7], 128, 128, 8
    $region21: #{sparse_lowrank_attention.1} parent=1 // pred_fallthru
      _
    // Predicated region
    $region22: #{sparse_lowrank_attention.1} parent=1 // pred_check
      _
    $region23: #{sparse_lowrank_attention.1} parent=1 // pred_check_branch
      %55 = sbr.rel (0) target = $region25
    $region24: #{sparse_lowrank_attention.1} parent=1 // pred_region
      %56 = dma.done [#allocation4], 1024
    $region25: #{sparse_lowrank_attention.1} parent=1 // pred_fallthru
      _
    // Predicated region
    $region26: #{sparse_lowrank_attention.1} parent=1 // pred_check
      _
    $region27: #{sparse_lowrank_attention.1} parent=1 // pred_check_branch
      %58 = sbr.rel (0) target = $region29
    $region28: #{sparse_lowrank_attention.1} parent=1 // pred_region
      %59 = dma.done [#allocation7], 1024
    $region29: #{sparse_lowrank_attention.1} parent=1 // pred_fallthru
      _
    // Predicated region
    $region30: #{sparse_lowrank_attention.1} parent=1 // pred_check
      _
    $region31: #{sparse_lowrank_attention.1} parent=1 // pred_check_branch
      %61 = sbr.rel (0) target = $region33
    $region32: #{sparse_lowrank_attention.1} parent=1 // pred_region
      %62 = dma.done [#allocation7], 1024
    $region33: #{sparse_lowrank_attention.1} parent=1 // pred_fallthru
      _
    %s63 = sld [smem:[#allocation2]]
    %v64 = vld [vmem:[#allocation3] sm:$0xff]
    %v65 = vld [vmem:[#allocation3 + $0x8] sm:$0xff]
    %v66 = vld [vmem:[#allocation3 + $0x10] sm:$0xff]
    %v67 = vld [vmem:[#allocation3 + $0x18] sm:$0xff]
    %v68 = vld [vmem:[#allocation3 + $0x20] sm:$0xff]
    %v69 = vld [vmem:[#allocation3 + $0x28] sm:$0xff]
    %v70 = vld [vmem:[#allocation3 + $0x30] sm:$0xff]
    %v71 = vld [vmem:[#allocation3 + $0x38] sm:$0xff]
    %v72 = vld [vmem:[#allocation6] sm:$0xff]
    %v73 = vld [vmem:[#allocation6 + $0x8] sm:$0xff]
    %v74 = vld [vmem:[#allocation6 + $0x10] sm:$0xff]
    %v75 = vld [vmem:[#allocation6 + $0x18] sm:$0xff]
    %v76 = vld [vmem:[#allocation6 + $0x20] sm:$0xff]
    %v77 = vld [vmem:[#allocation6 + $0x28] sm:$0xff]
    %v78 = vld [vmem:[#allocation6 + $0x30] sm:$0xff]
    %v79 = vld [vmem:[#allocation6 + $0x38] sm:$0xff]
    %v80 = vld [vmem:[#allocation8] sm:$0xff]
    %v81 = vld [vmem:[#allocation8 + $0x8] sm:$0xff]
    %v82 = vld [vmem:[#allocation8 + $0x10] sm:$0xff]
    %v83 = vld [vmem:[#allocation8 + $0x18] sm:$0xff]
    %v84 = vld [vmem:[#allocation8 + $0x20] sm:$0xff]
    %v85 = vld [vmem:[#allocation8 + $0x28] sm:$0xff]
    %v86 = vld [vmem:[#allocation8 + $0x30] sm:$0xff]
    %v87 = vld [vmem:[#allocation8 + $0x38] sm:$0xff]
    %v88 = vld [vmem:[%s1] sm:$0x1]
    %v89 = vlaneseq
    %v90 = vshrl.u32 %v89, 7
    %v91 = vadd.s32 %v90, 8
    %v92 = vadd.s32 %v90, 16
    %v93 = vadd.s32 %v90, 24
    %v94 = vadd.s32 %v90, 32
    %v95 = vadd.s32 %v90, 40
    %v96 = vadd.s32 %v90, 48
    %v97 = vadd.s32 %v90, 56
    %v98 = vlaneseq
    %v99 = vand.u32 %v98, 127
    %v100 = vshra.s32 %v90, 4
    %v101 = vshra.s32 %v91, 4
    %v102 = vshra.s32 %v92, 4
    %v103 = vshra.s32 %v93, 4
    %v104 = vshra.s32 %v94, 4
    %v105 = vshra.s32 %v95, 4
    %v106 = vshra.s32 %v96, 4
    %v107 = vshra.s32 %v97, 4
    %v108 = vshra.s32 %v99, 4
    %vm109 = vcmp.eq.s32.totalorder %v100, %v108
    %vm110 = vcmp.eq.s32.totalorder %v101, %v108
    %vm111 = vcmp.eq.s32.totalorder %v102, %v108
    %vm112 = vcmp.eq.s32.totalorder %v103, %v108
    %vm113 = vcmp.eq.s32.totalorder %v104, %v108
    %vm114 = vcmp.eq.s32.totalorder %v105, %v108
    %vm115 = vcmp.eq.s32.totalorder %v106, %v108
    %vm116 = vcmp.eq.s32.totalorder %v107, %v108
    %v117 = vsub.s32 %v90, %v99
    %v118 = vsub.s32 %v91, %v99
    %v119 = vsub.s32 %v92, %v99
    %v120 = vsub.s32 %v93, %v99
    %v121 = vsub.s32 %v94, %v99
    %v122 = vsub.s32 %v95, %v99
    %v123 = vsub.s32 %v96, %v99
    %v124 = vsub.s32 %v97, %v99
    %vm125 = vcmp.lt.s32.totalorder %v117, 0
    %v126 = vsub.s32 0, %v117
    %v127 = vsel %vm125, %v126, %v117
    %vm128 = vcmp.lt.s32.totalorder %v118, 0
    %v129 = vsub.s32 0, %v118
    %v130 = vsel %vm128, %v129, %v118
    %vm131 = vcmp.lt.s32.totalorder %v119, 0
    %v132 = vsub.s32 0, %v119
    %v133 = vsel %vm131, %v132, %v119
    %vm134 = vcmp.lt.s32.totalorder %v120, 0
    %v135 = vsub.s32 0, %v120
    %v136 = vsel %vm134, %v135, %v120
    %vm137 = vcmp.lt.s32.totalorder %v121, 0
    %v138 = vsub.s32 0, %v121
    %v139 = vsel %vm137, %v138, %v121
    %vm140 = vcmp.lt.s32.totalorder %v122, 0
    %v141 = vsub.s32 0, %v122
    %v142 = vsel %vm140, %v141, %v122
    %vm143 = vcmp.lt.s32.totalorder %v123, 0
    %v144 = vsub.s32 0, %v123
    %v145 = vsel %vm143, %v144, %v123
    %vm146 = vcmp.lt.s32.totalorder %v124, 0
    %v147 = vsub.s32 0, %v124
    %v148 = vsel %vm146, %v147, %v124
    %vm149 = vcmp.lt.s32.totalorder %v127, 2
    %vm150 = vcmp.lt.s32.totalorder %v130, 2
    %vm151 = vcmp.lt.s32.totalorder %v133, 2
    %vm152 = vcmp.lt.s32.totalorder %v136, 2
    %vm153 = vcmp.lt.s32.totalorder %v139, 2
    %vm154 = vcmp.lt.s32.totalorder %v142, 2
    %vm155 = vcmp.lt.s32.totalorder %v145, 2
    %vm156 = vcmp.lt.s32.totalorder %v148, 2
    %vm157 = vmand %vm109, %vm149
    %vm158 = vmand %vm110, %vm150
    %vm159 = vmand %vm111, %vm151
    %vm160 = vmand %vm112, %vm152
    %vm161 = vmand %vm113, %vm153
    %vm162 = vmand %vm114, %vm154
    %vm163 = vmand %vm115, %vm155
    %vm164 = vmand %vm116, %vm156
    %v165 = vsel %vm157, 0.0, -1e+09
    %v166 = vsel %vm158, 0.0, -1e+09
    %v167 = vsel %vm159, 0.0, -1e+09
    %v168 = vsel %vm160, 0.0, -1e+09
    %v169 = vsel %vm161, 0.0, -1e+09
    %v170 = vsel %vm162, 0.0, -1e+09
    %v171 = vsel %vm163, 0.0, -1e+09
    %v172 = vsel %vm164, 0.0, -1e+09
    %v173 = vsub.f32 1.0, %v88
    %v174 = vmul.f32 %v173, 1000000.0
    %v176 = vlaneseq
    %v177 = vshrl.u32 %v176, 7
    %v178 = vsub.s32 0, %v177
    %v179 = vrot.slane %v174, %v178
    %v181 = vsub.f32 %v165, %v179
    %v182 = vsub.f32 %v166, %v179
    %v183 = vsub.f32 %v167, %v179
    %v184 = vsub.f32 %v168, %v179
    %v185 = vsub.f32 %v169, %v179
    %v186 = vsub.f32 %v170, %v179
    %v187 = vsub.f32 %v171, %v179
    %v188 = vsub.f32 %v172, %v179
    %v189 = vmul.f32 %v64, 0.17677669
    %v190 = vmul.f32 %v65, 0.17677669
    %v191 = vmul.f32 %v66, 0.17677669
    %v192 = vmul.f32 %v67, 0.17677669
    %v193 = vmul.f32 %v68, 0.17677669
    %v194 = vmul.f32 %v69, 0.17677669
    %v195 = vmul.f32 %v70, 0.17677669
    %v196 = vmul.f32 %v71, 0.17677669
    %vm197 = vcmask 261120
    %v199 = vsel %vm197, %v189, 0
    %v202 = vsel %vm197, %v190, 0
    %v205 = vsel %vm197, %v191, 0
    %v208 = vsel %vm197, %v192, 0
    %v211 = vsel %vm197, %v193, 0
    %v214 = vsel %vm197, %v194, 0
    %v217 = vsel %vm197, %v195, 0
    %v220 = vsel %vm197, %v196, 0
    %v223 = vsel %vm197, %v72, 0
    %v226 = vsel %vm197, %v73, 0
    %v229 = vsel %vm197, %v74, 0
    %v232 = vsel %vm197, %v75, 0
    %v235 = vsel %vm197, %v76, 0
    %v238 = vsel %vm197, %v77, 0
    %v241 = vsel %vm197, %v78, 0
    %v244 = vsel %vm197, %v79, 0
    %246 = vmatprep.subr.mxu0 0.0
    %247 = vmatpush1.xpose.msra.mxu0 %v223
    %248 = vmatprep.subr.mxu0 0.0
    %249 = vmatpush1.xpose.msra.mxu0 %v226
    %250 = vmatprep.subr.mxu0 0.0
    %251 = vmatpush1.xpose.msra.mxu0 %v229
    %252 = vmatprep.subr.mxu0 0.0
    %253 = vmatpush1.xpose.msra.mxu0 %v232
    %254 = vmatprep.subr.mxu0 0.0
    %255 = vmatpush1.xpose.msra.mxu0 %v235
    %256 = vmatprep.subr.mxu0 0.0
    %257 = vmatpush1.xpose.msra.mxu0 %v238
    %258 = vmatprep.subr.mxu0 0.0
    %259 = vmatpush1.xpose.msra.mxu0 %v241
    %260 = vmatprep.subr.mxu0 0.0
    %261 = vmatpush1.xpose.msra.mxu0 %v244
    %262 = vmatprep.subr.mxu0 0.0
    %263 = vmatpush1.xpose.msra.mxu0 0.0
    %264 = vmatprep.subr.mxu0 0.0
    %265 = vmatpush1.xpose.msra.mxu0 0.0
    %266 = vmatprep.subr.mxu0 0.0
    %267 = vmatpush1.xpose.msra.mxu0 0.0
    %268 = vmatprep.subr.mxu0 0.0
    %269 = vmatpush1.xpose.msra.mxu0 0.0
    %270 = vmatprep.subr.mxu0 0.0
    %271 = vmatpush1.xpose.msra.mxu0 0.0
    %272 = vmatprep.subr.mxu0 0.0
    %273 = vmatpush1.xpose.msra.mxu0 0.0
    %274 = vmatprep.subr.mxu0 0.0
    %275 = vmatpush1.xpose.msra.mxu0 0.0
    %276 = vmatprep.subr.mxu0 0.0
    %277 = vmatpush1.xpose.msra.mxu0 0.0
    %278 = vmatprep.subr.mxu0 0.0
    %279 = vmatpush1.xpose.msra.mxu0 0.0
    %280 = vmatprep.subr.mxu0 0.0
    %281 = vmatpush1.xpose.msra.mxu0 0.0
    %282 = vmatprep.subr.mxu0 0.0
    %283 = vmatpush1.xpose.msra.mxu0 0.0
    %284 = vmatprep.subr.mxu0 0.0
    %285 = vmatpush1.xpose.msra.mxu0 0.0
    %286 = vmatprep.subr.mxu0 0.0
    %287 = vmatpush1.xpose.msra.mxu0 0.0
    %288 = vmatprep.subr.mxu0 0.0
    %289 = vmatpush1.xpose.msra.mxu0 0.0
    %290 = vmatprep.subr.mxu0 0.0
    %291 = vmatpush1.xpose.msra.mxu0 0.0
    %292 = vmatprep.subr.mxu0 0.0
    %293 = vmatpush1.xpose.msra.mxu0 0.0
    %294 = vmatprep.subr.mxu0 0.0
    %295 = vmatpush1.xpose.msra.mxu0 0.0
    %296 = vmatprep.subr.mxu0 0.0
    %297 = vmatpush1.xpose.msra.mxu0 0.0
    %298 = vmatprep.subr.mxu0 0.0
    %299 = vmatpush1.xpose.msra.mxu0 0.0
    %300 = vmatprep.subr.mxu0 0.0
    %301 = vmatpush1.xpose.msra.mxu0 0.0
    %302 = vmatprep.subr.mxu0 0.0
    %303 = vmatpush1.xpose.msra.mxu0 0.0
    %304 = vmatprep.subr.mxu0 0.0
    %305 = vmatpush1.xpose.msra.mxu0 0.0
    %306 = vmatprep.subr.mxu0 0.0
    %307 = vmatpush1.xpose.msra.mxu0 0.0
    %308 = vmatprep.subr.mxu0 0.0
    %309 = vmatpush1.xpose.msra.mxu0 0.0
    %310 = vmatprep.mubr.f32.mxu0 0.0
    %311 = vmatmul.mubr.f32.gmra.mrb[0].mxu0 %v199
    %v312 = vpop.f32.mrb[0].mxu0
    %v313 = vadd.f32 %v181, %v312
    %v314 = vpop.f32.mrb[0].mxu0
    %315 = vmatprep.mubr.f32.mxu0 0.0
    %316 = vmatmul.mubr.f32.gmra.mrb[0].mxu0 %v202
    %v317 = vpop.f32.mrb[0].mxu0
    %v318 = vadd.f32 %v182, %v317
    %v319 = vpop.f32.mrb[0].mxu0
    %320 = vmatprep.mubr.f32.mxu0 0.0
    %321 = vmatmul.mubr.f32.gmra.mrb[0].mxu0 %v205
    %v322 = vpop.f32.mrb[0].mxu0
    %v323 = vadd.f32 %v183, %v322
    %v324 = vpop.f32.mrb[0].mxu0
    %325 = vmatprep.mubr.f32.mxu0 0.0
    %326 = vmatmul.mubr.f32.gmra.mrb[0].mxu0 %v208
    %v327 = vpop.f32.mrb[0].mxu0
    %v328 = vadd.f32 %v184, %v327
    %v329 = vpop.f32.mrb[0].mxu0
    %330 = vmatprep.mubr.f32.mxu0 0.0
    %331 = vmatmul.mubr.f32.gmra.mrb[0].mxu0 %v211
    %v332 = vpop.f32.mrb[0].mxu0
    %v333 = vadd.f32 %v185, %v332
    %v334 = vpop.f32.mrb[0].mxu0
    %335 = vmatprep.mubr.f32.mxu0 0.0
    %336 = vmatmul.mubr.f32.gmra.mrb[0].mxu0 %v214
    %v337 = vpop.f32.mrb[0].mxu0
    %v338 = vadd.f32 %v186, %v337
    %v339 = vpop.f32.mrb[0].mxu0
    %340 = vmatprep.mubr.f32.mxu0 0.0
    %341 = vmatmul.mubr.f32.gmra.mrb[0].mxu0 %v217
    %v342 = vpop.f32.mrb[0].mxu0
    %v343 = vadd.f32 %v187, %v342
    %v344 = vpop.f32.mrb[0].mxu0
    %345 = vmatprep.mubr.f32.mxu0 0.0
    %346 = vmatmul.mubr.f32.gmra.mrb[0].mxu0 %v220
    %v347 = vpop.f32.mrb[0].mxu0
    %v348 = vadd.f32 %v188, %v347
    %v349 = vpop.f32.mrb[0].mxu0
    %350 = vdwg.mxu0
    %vm351 = vcmask 523264
    %v352 = vsel %vm351, %v313, -inf
    %353 = vmax.xlane.f32.xlu0 %v352
    %v354 = vpop.xlane.xlu0 %353
    %v355 = vsel %vm351, %v318, -inf
    %356 = vmax.xlane.f32.xlu0 %v355
    %v357 = vpop.xlane.xlu0 %356
    %v358 = vsel %vm351, %v323, -inf
    %359 = vmax.xlane.f32.xlu0 %v358
    %v360 = vpop.xlane.xlu0 %359
    %v361 = vsel %vm351, %v328, -inf
    %362 = vmax.xlane.f32.xlu0 %v361
    %v363 = vpop.xlane.xlu0 %362
    %v364 = vsel %vm351, %v333, -inf
    %365 = vmax.xlane.f32.xlu0 %v364
    %v366 = vpop.xlane.xlu0 %365
    %v367 = vsel %vm351, %v338, -inf
    %368 = vmax.xlane.f32.xlu0 %v367
    %v369 = vpop.xlane.xlu0 %368
    %v370 = vsel %vm351, %v343, -inf
    %371 = vmax.xlane.f32.xlu0 %v370
    %v372 = vpop.xlane.xlu0 %371
    %v373 = vsel %vm351, %v348, -inf
    %374 = vmax.xlane.f32.xlu0 %v373
    %v375 = vpop.xlane.xlu0 %374
    %v376 = vsub.f32 %v313, %v354
    %v377 = vsub.f32 %v318, %v357
    %v378 = vsub.f32 %v323, %v360
    %v379 = vsub.f32 %v328, %v363
    %v380 = vsub.f32 %v333, %v366
    %v381 = vsub.f32 %v338, %v369
    %v382 = vsub.f32 %v343, %v372
    %v383 = vsub.f32 %v348, %v375
    %v384 = vmul.f32 %v376, 1.442695
    %v385 = vpow.pop %v384
    %v386 = vmul.f32 %v377, 1.442695
    %v387 = vpow.pop %v386
    %v388 = vmul.f32 %v378, 1.442695
    %v389 = vpow.pop %v388
    %v390 = vmul.f32 %v379, 1.442695
    %v391 = vpow.pop %v390
    %v392 = vmul.f32 %v380, 1.442695
    %v393 = vpow.pop %v392
    %v394 = vmul.f32 %v381, 1.442695
    %v395 = vpow.pop %v394
    %v396 = vmul.f32 %v382, 1.442695
    %v397 = vpow.pop %v396
    %v398 = vmul.f32 %v383, 1.442695
    %v399 = vpow.pop %v398
    %v400 = vsel %vm351, %v385, 0.0
    %401 = vadd.xlane.f32.xlu0 %v400
    %v402 = vpop.xlane.xlu0 %401
    %v403 = vsel %vm351, %v387, 0.0
    %404 = vadd.xlane.f32.xlu0 %v403
    %v405 = vpop.xlane.xlu0 %404
    %v406 = vsel %vm351, %v389, 0.0
    %407 = vadd.xlane.f32.xlu0 %v406
    %v408 = vpop.xlane.xlu0 %407
    %v409 = vsel %vm351, %v391, 0.0
    %410 = vadd.xlane.f32.xlu0 %v409
    %v411 = vpop.xlane.xlu0 %410
    %v412 = vsel %vm351, %v393, 0.0
    %413 = vadd.xlane.f32.xlu0 %v412
    %v414 = vpop.xlane.xlu0 %413
    %v415 = vsel %vm351, %v395, 0.0
    %416 = vadd.xlane.f32.xlu0 %v415
    %v417 = vpop.xlane.xlu0 %416
    %v418 = vsel %vm351, %v397, 0.0
    %419 = vadd.xlane.f32.xlu0 %v418
    %v420 = vpop.xlane.xlu0 %419
    %v421 = vsel %vm351, %v399, 0.0
    %422 = vadd.xlane.f32.xlu0 %v421
    %v423 = vpop.xlane.xlu0 %422
    %v424 = vrcp.pop %v402
    %v425 = vmul.f32 %v385, %v424
    %v426 = vrcp.pop %v405
    %v427 = vmul.f32 %v387, %v426
    %v428 = vrcp.pop %v408
    %v429 = vmul.f32 %v389, %v428
    %v430 = vrcp.pop %v411
    %v431 = vmul.f32 %v391, %v430
    %v432 = vrcp.pop %v414
    %v433 = vmul.f32 %v393, %v432
    %v434 = vrcp.pop %v417
    %v435 = vmul.f32 %v395, %v434
    %v436 = vrcp.pop %v420
    %v437 = vmul.f32 %v397, %v436
    %v438 = vrcp.pop %v423
    %v439 = vmul.f32 %v399, %v438
    %v440 = vlaneseq
    %v441 = vshrl.u32 %v440, 7
    %v442 = vsub.s32 0, %v441
    %v443 = vrot.slane %v88, %v442
    %445 = vbcast.lane.b32.xlu0 %v443, 256
    %v446 = vpop.permute.xlu0 %445
    %s448 = sor.u32 256, 8
    %449 = vbcast.lane.b32.xlu0 %v443, %s448
    %v450 = vpop.permute.xlu0 %449
    %s452 = sor.u32 256, 16
    %453 = vbcast.lane.b32.xlu0 %v443, %s452
    %v454 = vpop.permute.xlu0 %453
    %s456 = sor.u32 256, 24
    %457 = vbcast.lane.b32.xlu0 %v443, %s456
    %v458 = vpop.permute.xlu0 %457
    %s460 = sor.u32 256, 32
    %461 = vbcast.lane.b32.xlu0 %v443, %s460
    %v462 = vpop.permute.xlu0 %461
    %s464 = sor.u32 256, 40
    %465 = vbcast.lane.b32.xlu0 %v443, %s464
    %v466 = vpop.permute.xlu0 %465
    %s468 = sor.u32 256, 48
    %469 = vbcast.lane.b32.xlu0 %v443, %s468
    %v470 = vpop.permute.xlu0 %469
    %s472 = sor.u32 256, 56
    %473 = vbcast.lane.b32.xlu0 %v443, %s472
    %v474 = vpop.permute.xlu0 %473
    %v475 = vmul.f32 %v80, %v446
    %v476 = vmul.f32 %v81, %v450
    %v477 = vmul.f32 %v82, %v454
    %v478 = vmul.f32 %v83, %v458
    %v479 = vmul.f32 %v84, %v462
    %v480 = vmul.f32 %v85, %v466
    %v481 = vmul.f32 %v86, %v470
    %v482 = vmul.f32 %v87, %v474
    %vm483 = vcmp.gt.f32.partialorder %v64, 0.0
    %vm484 = vcmp.gt.f32.partialorder %v65, 0.0
    %vm485 = vcmp.gt.f32.partialorder %v66, 0.0
    %vm486 = vcmp.gt.f32.partialorder %v67, 0.0
    %vm487 = vcmp.gt.f32.partialorder %v68, 0.0
    %vm488 = vcmp.gt.f32.partialorder %v69, 0.0
    %vm489 = vcmp.gt.f32.partialorder %v70, 0.0
    %vm490 = vcmp.gt.f32.partialorder %v71, 0.0
    %v491 = vmul.f32 %v64, 1.442695
    %v492 = vpow.pop %v491
    %v493 = vmul.f32 %v65, 1.442695
    %v494 = vpow.pop %v493
    %v495 = vmul.f32 %v66, 1.442695
    %v496 = vpow.pop %v495
    %v497 = vmul.f32 %v67, 1.442695
    %v498 = vpow.pop %v497
    %v499 = vmul.f32 %v68, 1.442695
    %v500 = vpow.pop %v499
    %v501 = vmul.f32 %v69, 1.442695
    %v502 = vpow.pop %v501
    %v503 = vmul.f32 %v70, 1.442695
    %v504 = vpow.pop %v503
    %v505 = vmul.f32 %v71, 1.442695
    %v506 = vpow.pop %v505
    %v507 = vsub.f32 %v492, 1.0
    %v508 = vsub.f32 %v494, 1.0
    %v509 = vsub.f32 %v496, 1.0
    %v510 = vsub.f32 %v498, 1.0
    %v511 = vsub.f32 %v500, 1.0
    %v512 = vsub.f32 %v502, 1.0
    %v513 = vsub.f32 %v504, 1.0
    %v514 = vsub.f32 %v506, 1.0
    %v515 = vsel %vm483, %v64, %v507
    %v516 = vsel %vm484, %v65, %v508
    %v517 = vsel %vm485, %v66, %v509
    %v518 = vsel %vm486, %v67, %v510
    %v519 = vsel %vm487, %v68, %v511
    %v520 = vsel %vm488, %v69, %v512
    %v521 = vsel %vm489, %v70, %v513
    %v522 = vsel %vm490, %v71, %v514
    %v523 = vadd.f32 %v515, 1.0
    %v524 = vadd.f32 %v516, 1.0
    %v525 = vadd.f32 %v517, 1.0
    %v526 = vadd.f32 %v518, 1.0
    %v527 = vadd.f32 %v519, 1.0
    %v528 = vadd.f32 %v520, 1.0
    %v529 = vadd.f32 %v521, 1.0
    %v530 = vadd.f32 %v522, 1.0
    %v531 = vmax.f32 %v64, 0.0
    %v532 = vmax.f32 %v65, 0.0
    %v533 = vmax.f32 %v66, 0.0
    %v534 = vmax.f32 %v67, 0.0
    %v535 = vmax.f32 %v68, 0.0
    %v536 = vmax.f32 %v69, 0.0
    %v537 = vmax.f32 %v70, 0.0
    %v538 = vmax.f32 %v71, 0.0
    %547 = vrot.lane.b32.xlu0 %v531, 32
    %v548 = vpop.permute.xlu0 %547
    %549 = vrot.lane.b32.xlu0 %v532, 32
    %v550 = vpop.permute.xlu0 %549
    %551 = vrot.lane.b32.xlu0 %v533, 32
    %v552 = vpop.permute.xlu0 %551
    %553 = vrot.lane.b32.xlu0 %v534, 32
    %v554 = vpop.permute.xlu0 %553
    %555 = vrot.lane.b32.xlu0 %v535, 32
    %v556 = vpop.permute.xlu0 %555
    %557 = vrot.lane.b32.xlu0 %v536, 32
    %v558 = vpop.permute.xlu0 %557
    %559 = vrot.lane.b32.xlu0 %v537, 32
    %v560 = vpop.permute.xlu0 %559
    %561 = vrot.lane.b32.xlu0 %v538, 32
    %v562 = vpop.permute.xlu0 %561
    %v571 = vsel %vm197, %v523, %v548
    %v572 = vsel %vm197, %v524, %v550
    %v573 = vsel %vm197, %v525, %v552
    %v574 = vsel %vm197, %v526, %v554
    %v575 = vsel %vm197, %v527, %v556
    %v576 = vsel %vm197, %v528, %v558
    %v577 = vsel %vm197, %v529, %v560
    %v578 = vsel %vm197, %v530, %v562
    %vm579 = vcmp.gt.f32.partialorder %v72, 0.0
    %vm580 = vcmp.gt.f32.partialorder %v73, 0.0
    %vm581 = vcmp.gt.f32.partialorder %v74, 0.0
    %vm582 = vcmp.gt.f32.partialorder %v75, 0.0
    %vm583 = vcmp.gt.f32.partialorder %v76, 0.0
    %vm584 = vcmp.gt.f32.partialorder %v77, 0.0
    %vm585 = vcmp.gt.f32.partialorder %v78, 0.0
    %vm586 = vcmp.gt.f32.partialorder %v79, 0.0
    %v587 = vmul.f32 %v72, 1.442695
    %v588 = vpow.pop %v587
    %v589 = vmul.f32 %v73, 1.442695
    %v590 = vpow.pop %v589
    %v591 = vmul.f32 %v74, 1.442695
    %v592 = vpow.pop %v591
    %v593 = vmul.f32 %v75, 1.442695
    %v594 = vpow.pop %v593
    %v595 = vmul.f32 %v76, 1.442695
    %v596 = vpow.pop %v595
    %v597 = vmul.f32 %v77, 1.442695
    %v598 = vpow.pop %v597
    %v599 = vmul.f32 %v78, 1.442695
    %v600 = vpow.pop %v599
    %v601 = vmul.f32 %v79, 1.442695
    %v602 = vpow.pop %v601
    %v603 = vsub.f32 %v588, 1.0
    %v604 = vsub.f32 %v590, 1.0
    %v605 = vsub.f32 %v592, 1.0
    %v606 = vsub.f32 %v594, 1.0
    %v607 = vsub.f32 %v596, 1.0
    %v608 = vsub.f32 %v598, 1.0
    %v609 = vsub.f32 %v600, 1.0
    %v610 = vsub.f32 %v602, 1.0
    %v611 = vsel %vm579, %v72, %v603
    %v612 = vsel %vm580, %v73, %v604
    %v613 = vsel %vm581, %v74, %v605
    %v614 = vsel %vm582, %v75, %v606
    %v615 = vsel %vm583, %v76, %v607
    %v616 = vsel %vm584, %v77, %v608
    %v617 = vsel %vm585, %v78, %v609
    %v618 = vsel %vm586, %v79, %v610
    %v619 = vadd.f32 %v611, 1.0
    %v620 = vadd.f32 %v612, 1.0
    %v621 = vadd.f32 %v613, 1.0
    %v622 = vadd.f32 %v614, 1.0
    %v623 = vadd.f32 %v615, 1.0
    %v624 = vadd.f32 %v616, 1.0
    %v625 = vadd.f32 %v617, 1.0
    %v626 = vadd.f32 %v618, 1.0
    %v627 = vmax.f32 %v72, 0.0
    %v628 = vmax.f32 %v73, 0.0
    %v629 = vmax.f32 %v74, 0.0
    %v630 = vmax.f32 %v75, 0.0
    %v631 = vmax.f32 %v76, 0.0
    %v632 = vmax.f32 %v77, 0.0
    %v633 = vmax.f32 %v78, 0.0
    %v634 = vmax.f32 %v79, 0.0
    %643 = vrot.lane.b32.xlu0 %v627, 32
    %v644 = vpop.permute.xlu0 %643
    %645 = vrot.lane.b32.xlu0 %v628, 32
    %v646 = vpop.permute.xlu0 %645
    %647 = vrot.lane.b32.xlu0 %v629, 32
    %v648 = vpop.permute.xlu0 %647
    %649 = vrot.lane.b32.xlu0 %v630, 32
    %v650 = vpop.permute.xlu0 %649
    %651 = vrot.lane.b32.xlu0 %v631, 32
    %v652 = vpop.permute.xlu0 %651
    %653 = vrot.lane.b32.xlu0 %v632, 32
    %v654 = vpop.permute.xlu0 %653
    %655 = vrot.lane.b32.xlu0 %v633, 32
    %v656 = vpop.permute.xlu0 %655
    %657 = vrot.lane.b32.xlu0 %v634, 32
    %v658 = vpop.permute.xlu0 %657
    %v667 = vsel %vm197, %v619, %v644
    %v668 = vsel %vm197, %v620, %v646
    %v669 = vsel %vm197, %v621, %v648
    %v670 = vsel %vm197, %v622, %v650
    %v671 = vsel %vm197, %v623, %v652
    %v672 = vsel %vm197, %v624, %v654
    %v673 = vsel %vm197, %v625, %v656
    %v674 = vsel %vm197, %v626, %v658
    %v675 = vmul.f32 %v667, %v446
    %v676 = vmul.f32 %v668, %v450
    %v677 = vmul.f32 %v669, %v454
    %v678 = vmul.f32 %v670, %v458
    %v679 = vmul.f32 %v671, %v462
    %v680 = vmul.f32 %v672, %v466
    %v681 = vmul.f32 %v673, %v470
    %v682 = vmul.f32 %v674, %v474
    %v684 = vsel %vm351, %v571, 0
    %v687 = vsel %vm351, %v572, 0
    %v690 = vsel %vm351, %v573, 0
    %v693 = vsel %vm351, %v574, 0
    %v696 = vsel %vm351, %v575, 0
    %v699 = vsel %vm351, %v576, 0
    %v702 = vsel %vm351, %v577, 0
    %v705 = vsel %vm351, %v578, 0
    %v708 = vsel %vm351, %v675, 0
    %v711 = vsel %vm351, %v676, 0
    %v714 = vsel %vm351, %v677, 0
    %v717 = vsel %vm351, %v678, 0
    %v720 = vsel %vm351, %v679, 0
    %v723 = vsel %vm351, %v680, 0
    %v726 = vsel %vm351, %v681, 0
    %v729 = vsel %vm351, %v682, 0
    %731 = vmatprep.subr.mxu0 0.0
    %732 = vmatpush1.xpose.msra.mxu0 %v708
    %733 = vmatprep.subr.mxu0 0.0
    %734 = vmatpush1.xpose.msra.mxu0 %v711
    %735 = vmatprep.subr.mxu0 0.0
    %736 = vmatpush1.xpose.msra.mxu0 %v714
    %737 = vmatprep.subr.mxu0 0.0
    %738 = vmatpush1.xpose.msra.mxu0 %v717
    %739 = vmatprep.subr.mxu0 0.0
    %740 = vmatpush1.xpose.msra.mxu0 %v720
    %741 = vmatprep.subr.mxu0 0.0
    %742 = vmatpush1.xpose.msra.mxu0 %v723
    %743 = vmatprep.subr.mxu0 0.0
    %744 = vmatpush1.xpose.msra.mxu0 %v726
    %745 = vmatprep.subr.mxu0 0.0
    %746 = vmatpush1.xpose.msra.mxu0 %v729
    %747 = vmatprep.subr.mxu0 0.0
    %748 = vmatpush1.xpose.msra.mxu0 0.0
    %749 = vmatprep.subr.mxu0 0.0
    %750 = vmatpush1.xpose.msra.mxu0 0.0
    %751 = vmatprep.subr.mxu0 0.0
    %752 = vmatpush1.xpose.msra.mxu0 0.0
    %753 = vmatprep.subr.mxu0 0.0
    %754 = vmatpush1.xpose.msra.mxu0 0.0
    %755 = vmatprep.subr.mxu0 0.0
    %756 = vmatpush1.xpose.msra.mxu0 0.0
    %757 = vmatprep.subr.mxu0 0.0
    %758 = vmatpush1.xpose.msra.mxu0 0.0
    %759 = vmatprep.subr.mxu0 0.0
    %760 = vmatpush1.xpose.msra.mxu0 0.0
    %761 = vmatprep.subr.mxu0 0.0
    %762 = vmatpush1.xpose.msra.mxu0 0.0
    %763 = vmatprep.subr.mxu0 0.0
    %764 = vmatpush1.xpose.msra.mxu0 0.0
    %765 = vmatprep.subr.mxu0 0.0
    %766 = vmatpush1.xpose.msra.mxu0 0.0
    %767 = vmatprep.subr.mxu0 0.0
    %768 = vmatpush1.xpose.msra.mxu0 0.0
    %769 = vmatprep.subr.mxu0 0.0
    %770 = vmatpush1.xpose.msra.mxu0 0.0
    %771 = vmatprep.subr.mxu0 0.0
    %772 = vmatpush1.xpose.msra.mxu0 0.0
    %773 = vmatprep.subr.mxu0 0.0
    %774 = vmatpush1.xpose.msra.mxu0 0.0
    %775 = vmatprep.subr.mxu0 0.0
    %776 = vmatpush1.xpose.msra.mxu0 0.0
    %777 = vmatprep.subr.mxu0 0.0
    %778 = vmatpush1.xpose.msra.mxu0 0.0
    %779 = vmatprep.subr.mxu0 0.0
    %780 = vmatpush1.xpose.msra.mxu0 0.0
    %781 = vmatprep.subr.mxu0 0.0
    %782 = vmatpush1.xpose.msra.mxu0 0.0
    %783 = vmatprep.subr.mxu0 0.0
    %784 = vmatpush1.xpose.msra.mxu0 0.0
    %785 = vmatprep.subr.mxu0 0.0
    %786 = vmatpush1.xpose.msra.mxu0 0.0
    %787 = vmatprep.subr.mxu0 0.0
    %788 = vmatpush1.xpose.msra.mxu0 0.0
    %789 = vmatprep.subr.mxu0 0.0
    %790 = vmatpush1.xpose.msra.mxu0 0.0
    %791 = vmatprep.subr.mxu0 0.0
    %792 = vmatpush1.xpose.msra.mxu0 0.0
    %793 = vmatprep.subr.mxu0 0.0
    %794 = vmatpush1.xpose.msra.mxu0 0.0
    %795 = vmatprep.mubr.f32.mxu0 0.0
    %796 = vmatmul.mubr.f32.gmra.mrb[0].mxu0 %v684
    %v797 = vpop.f32.mrb[0].mxu0
    %v798 = vadd.f32 0.0, %v797
    %v799 = vpop.f32.mrb[0].mxu0
    %800 = vmatprep.mubr.f32.mxu0 0.0
    %801 = vmatmul.mubr.f32.gmra.mrb[0].mxu0 %v687
    %v802 = vpop.f32.mrb[0].mxu0
    %v803 = vadd.f32 0.0, %v802
    %v804 = vpop.f32.mrb[0].mxu0
    %805 = vmatprep.mubr.f32.mxu0 0.0
    %806 = vmatmul.mubr.f32.gmra.mrb[0].mxu0 %v690
    %v807 = vpop.f32.mrb[0].mxu0
    %v808 = vadd.f32 0.0, %v807
    %v809 = vpop.f32.mrb[0].mxu0
    %810 = vmatprep.mubr.f32.mxu0 0.0
    %811 = vmatmul.mubr.f32.gmra.mrb[0].mxu0 %v693
    %v812 = vpop.f32.mrb[0].mxu0
    %v813 = vadd.f32 0.0, %v812
    %v814 = vpop.f32.mrb[0].mxu0
    %815 = vmatprep.mubr.f32.mxu0 0.0
    %816 = vmatmul.mubr.f32.gmra.mrb[0].mxu0 %v696
    %v817 = vpop.f32.mrb[0].mxu0
    %v818 = vadd.f32 0.0, %v817
    %v819 = vpop.f32.mrb[0].mxu0
    %820 = vmatprep.mubr.f32.mxu0 0.0
    %821 = vmatmul.mubr.f32.gmra.mrb[0].mxu0 %v699
    %v822 = vpop.f32.mrb[0].mxu0
    %v823 = vadd.f32 0.0, %v822
    %v824 = vpop.f32.mrb[0].mxu0
    %825 = vmatprep.mubr.f32.mxu0 0.0
    %826 = vmatmul.mubr.f32.gmra.mrb[0].mxu0 %v702
    %v827 = vpop.f32.mrb[0].mxu0
    %v828 = vadd.f32 0.0, %v827
    %v829 = vpop.f32.mrb[0].mxu0
    %830 = vmatprep.mubr.f32.mxu0 0.0
    %831 = vmatmul.mubr.f32.gmra.mrb[0].mxu0 %v705
    %v832 = vpop.f32.mrb[0].mxu0
    %v833 = vadd.f32 0.0, %v832
    %v834 = vpop.f32.mrb[0].mxu0
    %835 = vdwg.mxu0
    %v836 = vsel %vm109, %v798, 0.0
    %v837 = vsel %vm110, %v803, 0.0
    %v838 = vsel %vm111, %v808, 0.0
    %v839 = vsel %vm112, %v813, 0.0
    %v840 = vsel %vm113, %v818, 0.0
    %v841 = vsel %vm114, %v823, 0.0
    %v842 = vsel %vm115, %v828, 0.0
    %v843 = vsel %vm116, %v833, 0.0
    %s844 = ssub.f32 1.0, %s63
    %s845 = smul.f32 %s844, 0.125
    %854 = vrot.lane.b32.xlu0 %v836, 64
    %v855 = vpop.permute.xlu0 %854
    %856 = vrot.lane.b32.xlu0 %v837, 64
    %v857 = vpop.permute.xlu0 %856
    %858 = vrot.lane.b32.xlu0 %v838, 64
    %v859 = vpop.permute.xlu0 %858
    %860 = vrot.lane.b32.xlu0 %v839, 64
    %v861 = vpop.permute.xlu0 %860
    %862 = vrot.lane.b32.xlu0 %v840, 64
    %v863 = vpop.permute.xlu0 %862
    %864 = vrot.lane.b32.xlu0 %v841, 64
    %v865 = vpop.permute.xlu0 %864
    %866 = vrot.lane.b32.xlu0 %v842, 64
    %v867 = vpop.permute.xlu0 %866
    %868 = vrot.lane.b32.xlu0 %v843, 64
    %v869 = vpop.permute.xlu0 %868
    %v878 = vsel %vm351, %v425, %v855
    %v879 = vsel %vm351, %v427, %v857
    %v880 = vsel %vm351, %v429, %v859
    %v881 = vsel %vm351, %v431, %v861
    %v882 = vsel %vm351, %v433, %v863
    %v883 = vsel %vm351, %v435, %v865
    %v884 = vsel %vm351, %v437, %v867
    %v885 = vsel %vm351, %v439, %v869
    %v886 = vstv %s63
    %v887 = vmul.f32 %v886, %v80
    %v888 = vmul.f32 %v886, %v81
    %v889 = vmul.f32 %v886, %v82
    %v890 = vmul.f32 %v886, %v83
    %v891 = vmul.f32 %v886, %v84
    %v892 = vmul.f32 %v886, %v85
    %v893 = vmul.f32 %v886, %v86
    %v894 = vmul.f32 %v886, %v87
    %v895 = vstv %s845
    %v896 = vmul.f32 %v895, %v475
    %v897 = vmul.f32 %v895, %v476
    %v898 = vmul.f32 %v895, %v477
    %v899 = vmul.f32 %v895, %v478
    %v900 = vmul.f32 %v895, %v479
    %v901 = vmul.f32 %v895, %v480
    %v902 = vmul.f32 %v895, %v481
    %v903 = vmul.f32 %v895, %v482
    %904 = vmatprep.subr.mxu0 0.0
    %905 = vmatpush1.msra.mxu0 %v887
    %906 = vmatprep.subr.mxu0 0.0
    %907 = vmatpush1.msra.mxu0 %v888
    %908 = vmatprep.subr.mxu0 0.0
    %909 = vmatpush1.msra.mxu0 %v889
    %910 = vmatprep.subr.mxu0 0.0
    %911 = vmatpush1.msra.mxu0 %v890
    %912 = vmatprep.subr.mxu0 0.0
    %913 = vmatpush1.msra.mxu0 %v891
    %914 = vmatprep.subr.mxu0 0.0
    %915 = vmatpush1.msra.mxu0 %v892
    %916 = vmatprep.subr.mxu0 0.0
    %917 = vmatpush1.msra.mxu0 %v893
    %918 = vmatprep.subr.mxu0 0.0
    %919 = vmatpush1.msra.mxu0 %v894
    %920 = vmatprep.subr.mxu0 0.0
    %921 = vmatpush1.msra.mxu0 %v896
    %922 = vmatprep.subr.mxu0 0.0
    %923 = vmatpush1.msra.mxu0 %v897
    %924 = vmatprep.subr.mxu0 0.0
    %925 = vmatpush1.msra.mxu0 %v898
    %926 = vmatprep.subr.mxu0 0.0
    %927 = vmatpush1.msra.mxu0 %v899
    %928 = vmatprep.subr.mxu0 0.0
    %929 = vmatpush1.msra.mxu0 %v900
    %930 = vmatprep.subr.mxu0 0.0
    %931 = vmatpush1.msra.mxu0 %v901
    %932 = vmatprep.subr.mxu0 0.0
    %933 = vmatpush1.msra.mxu0 %v902
    %934 = vmatprep.subr.mxu0 0.0
    %935 = vmatpush1.msra.mxu0 %v903
    %936 = vmatprep.subr.mxu0 0.0
    %937 = vmatpush1.msra.mxu0 0.0
    %938 = vmatprep.subr.mxu0 0.0
    %939 = vmatpush1.msra.mxu0 0.0
    %940 = vmatprep.subr.mxu0 0.0
    %941 = vmatpush1.msra.mxu0 0.0
    %942 = vmatprep.subr.mxu0 0.0
    %943 = vmatpush1.msra.mxu0 0.0
    %944 = vmatprep.subr.mxu0 0.0
    %945 = vmatpush1.msra.mxu0 0.0
    %946 = vmatprep.subr.mxu0 0.0
    %947 = vmatpush1.msra.mxu0 0.0
    %948 = vmatprep.subr.mxu0 0.0
    %949 = vmatpush1.msra.mxu0 0.0
    %950 = vmatprep.subr.mxu0 0.0
    %951 = vmatpush1.msra.mxu0 0.0
    %952 = vmatprep.subr.mxu0 0.0
    %953 = vmatpush1.msra.mxu0 0.0
    %954 = vmatprep.subr.mxu0 0.0
    %955 = vmatpush1.msra.mxu0 0.0
    %956 = vmatprep.subr.mxu0 0.0
    %957 = vmatpush1.msra.mxu0 0.0
    %958 = vmatprep.subr.mxu0 0.0
    %959 = vmatpush1.msra.mxu0 0.0
    %960 = vmatprep.subr.mxu0 0.0
    %961 = vmatpush1.msra.mxu0 0.0
    %962 = vmatprep.subr.mxu0 0.0
    %963 = vmatpush1.msra.mxu0 0.0
    %964 = vmatprep.subr.mxu0 0.0
    %965 = vmatpush1.msra.mxu0 0.0
    %966 = vmatprep.subr.mxu0 0.0
    %967 = vmatpush1.msra.mxu0 0.0
    %968 = vmatprep.mubr.f32.mxu0 0.0
    %969 = vmatmul.mubr.f32.gmra.mrb[0].mxu0 %v878
    %v970 = vpop.f32.mrb[0].mxu0
    %v971 = vadd.f32 0.0, %v970
    %v972 = vpop.f32.mrb[0].mxu0
    %973 = vmatprep.mubr.f32.mxu0 0.0
    %974 = vmatmul.mubr.f32.gmra.mrb[0].mxu0 %v879
    %v975 = vpop.f32.mrb[0].mxu0
    %v976 = vadd.f32 0.0, %v975
    %v977 = vpop.f32.mrb[0].mxu0
    %978 = vmatprep.mubr.f32.mxu0 0.0
    %979 = vmatmul.mubr.f32.gmra.mrb[0].mxu0 %v880
    %v980 = vpop.f32.mrb[0].mxu0
    %v981 = vadd.f32 0.0, %v980
    %v982 = vpop.f32.mrb[0].mxu0
    %983 = vmatprep.mubr.f32.mxu0 0.0
    %984 = vmatmul.mubr.f32.gmra.mrb[0].mxu0 %v881
    %v985 = vpop.f32.mrb[0].mxu0
    %v986 = vadd.f32 0.0, %v985
    %v987 = vpop.f32.mrb[0].mxu0
    %988 = vmatprep.mubr.f32.mxu0 0.0
    %989 = vmatmul.mubr.f32.gmra.mrb[0].mxu0 %v882
    %v990 = vpop.f32.mrb[0].mxu0
    %v991 = vadd.f32 0.0, %v990
    %v992 = vpop.f32.mrb[0].mxu0
    %993 = vmatprep.mubr.f32.mxu0 0.0
    %994 = vmatmul.mubr.f32.gmra.mrb[0].mxu0 %v883
    %v995 = vpop.f32.mrb[0].mxu0
    %v996 = vadd.f32 0.0, %v995
    %v997 = vpop.f32.mrb[0].mxu0
    %998 = vmatprep.mubr.f32.mxu0 0.0
    %999 = vmatmul.mubr.f32.gmra.mrb[0].mxu0 %v884
    %v1000 = vpop.f32.mrb[0].mxu0
    %v1001 = vadd.f32 0.0, %v1000
    %v1002 = vpop.f32.mrb[0].mxu0
    %1003 = vmatprep.mubr.f32.mxu0 0.0
    %1004 = vmatmul.mubr.f32.gmra.mrb[0].mxu0 %v885
    %v1005 = vpop.f32.mrb[0].mxu0
    %v1006 = vadd.f32 0.0, %v1005
    %v1007 = vpop.f32.mrb[0].mxu0
    %1008 = vdwg.mxu0
    %1009 = vst.msk [vmem:[#allocation9] sm:$0xff] %vm197, %v971
    %1010 = vst.msk [vmem:[#allocation9 + $0x8] sm:$0xff] %vm197, %v976
    %1011 = vst.msk [vmem:[#allocation9 + $0x10] sm:$0xff] %vm197, %v981
    %1012 = vst.msk [vmem:[#allocation9 + $0x18] sm:$0xff] %vm197, %v986
    %1013 = vst.msk [vmem:[#allocation9 + $0x20] sm:$0xff] %vm197, %v991
    %1014 = vst.msk [vmem:[#allocation9 + $0x28] sm:$0xff] %vm197, %v996
    %1015 = vst.msk [vmem:[#allocation9 + $0x30] sm:$0xff] %vm197, %v1001
    %1016 = vst.msk [vmem:[#allocation9 + $0x38] sm:$0xff] %vm197, %v1006
    // Predicated region
    $region34: #{sparse_lowrank_attention.1} parent=1 // pred_check
      _
    $region35: #{sparse_lowrank_attention.1} parent=1 // pred_check_branch
      %1018 = sbr.rel (0) target = $region37
    $region36: #{sparse_lowrank_attention.1} parent=1 // pred_region
      %s1020 = ssub.s32 1024, 1024
      %1021 = vsyncadd [#allocation5], %s1020
      %s1022 = sshll.u32 [#allocation9], 4
      %s1023 = int_to_ptr.vmem [resolvable:$true] %s1022
      %1028 = dma.vmem_to_hbm [thread:$0]  %s1023, 1024, %s5, [#allocation5], 128, 128, 8
    $region37: #{sparse_lowrank_attention.1} parent=1 // pred_fallthru
      _
    // Predicated region
    $region38: #{sparse_lowrank_attention.1} parent=1 // pred_check
      _
    $region39: #{sparse_lowrank_attention.1} parent=1 // pred_check_branch
      %1030 = sbr.rel (0) target = $region41
    $region40: #{sparse_lowrank_attention.1} parent=1 // pred_region
      %1031 = dma.done [#allocation5], 1024
    $region41: #{sparse_lowrank_attention.1} parent=1 // pred_fallthru
      _
    %1032 = vsyncpa [#allocation4], 1
    %1033 = vsyncpa [#allocation7], 1
    %1034 = vsyncpa [#allocation5], 1

</llo_original>
